<compile_context>
chip_gen: v6e
topology: v6e:2x2x1
jax: 0.10.0
libtpu: 0.0.40
codegen_flags: <defaults>
</compile_context>

<pallas_src>
import functools

import jax
import jax.numpy as jnp
from jax.experimental import pallas as pl
from jax.experimental.pallas import tpu as pltpu

_LANE = 128


def _round_up(x, m):
    return ((x + m - 1) // m) * m


def _resize_align_corners(x, out_h, out_w):
    """Bilinear resize with align_corners=True for [B, M, AH, AW] arrays (glue)."""
    B, M, AH, AW = x.shape
    if (AH, AW) == (out_h, out_w):
        return x

    def src_coords(out_n, in_n):
        if out_n == 1:
            return jnp.zeros((1,), jnp.float32)
        scale = (in_n - 1) / (out_n - 1)
        return jnp.arange(out_n, dtype=jnp.float32) * scale

    ys = src_coords(out_h, AH)
    xs = src_coords(out_w, AW)
    y0 = jnp.floor(ys).astype(jnp.int32)
    y1 = jnp.minimum(y0 + 1, AH - 1)
    x0 = jnp.floor(xs).astype(jnp.int32)
    x1 = jnp.minimum(x0 + 1, AW - 1)
    wy = (ys - y0.astype(jnp.float32))[:, None]   # [H, 1]
    wx = (xs - x0.astype(jnp.float32))[None, :]   # [1, W]

    def gather(yi, xi):
        return x[:, :, yi, :][:, :, :, xi]        # [B, M, H, W]

    top = gather(y0, x0) * (1.0 - wx) + gather(y0, x1) * wx
    bot = gather(y1, x0) * (1.0 - wx) + gather(y1, x1) * wx
    return top * (1.0 - wy) + bot * wy


def _make_kernel(norm, n_real):
    """norm: 1/2/3 (static). n_real: number of real feature channels N."""

    def kernel(a_ref, f_ref, o_ref, acc_ref):
        k = pl.program_id(1)

        @pl.when(k == 0)
        def _():
            acc_ref[...] = jnp.zeros_like(acc_ref)

        # Native-dtype operands straight to the MXU; f32 accumulation.
        a = a_ref[...]                      # [Bt, M,    TK]
        f = f_ref[...]                      # [Bt, Naug, TK]
        acc_ref[...] += jax.lax.dot_general(
            a, f,
            dimension_numbers=(((2,), (2,)), ((0,), (0,))),
            preferred_element_type=jnp.float32)         # [Bt, M, Naug]

        @pl.when(k == pl.num_programs(1) - 1)
        def _():
            acc = acc_ref[...]
            if norm == 2:
                # F.normalize(p=2, dim=-1), eps=1e-12:  x / max(||x||, 1e-12)
                nrm2 = jnp.sum(acc * acc, axis=-1, keepdims=True)
                fm = acc * jax.lax.rsqrt(jnp.maximum(nrm2, 1e-24))
            elif norm in (1, 3):
                # Last accumulator column is the attention row-sum (ones-row fold).
                fm = acc[..., :n_real]
                w = acc[..., n_real:n_real + 1]
                if norm == 3:
                    w = w + 1e-8
                fm = fm / w
            else:
                fm = acc
            # NOTE: output last dim N is usually < 128 (masked stores); output
            # bytes are tiny so this is acceptable.
            o_ref[...] = fm.astype(o_ref.dtype)

    return kernel


@functools.partial(jax.jit, static_argnames=("norm",))
def attention_pooling(features, attentions, norm=2):
    """features: [B, N, H, W], attentions: [B, M, AH, AW] -> [B, M, N]."""
    # TODO(synk): the 5-D features path ('imjk,imnjk->imn') is not implemented.
    B, N, H, W = features.shape
    _, M, AH, AW = attentions.shape
    HW = H * W
    dtype = features.dtype
    itemsize = jnp.dtype(dtype).itemsize

    attentions = _resize_align_corners(attentions.astype(jnp.float32), H, W)
    if norm == 1:
        attentions = attentions + 1e-8

    a2 = attentions.reshape(B, M, HW).astype(dtype)
    f2 = features.reshape(B, N, HW)

    # Fold the attention row-sum (needed by norm 1/3) into the matmul by
    # appending a ones-row to the features tile.
    if norm in (1, 3):
        f2 = jnp.concatenate([f2, jnp.ones((B, 1, HW), dtype)], axis=1)
    Naug = f2.shape[1]

    # --- tiling choices ---------------------------------------------------
    # K (reduction) tile over the flattened spatial axis, multiple of 128.
    TK_TARGET = 2048
    TK = min(TK_TARGET, _round_up(HW, _LANE))
    HWp = _round_up(HW, TK)
    nk = HWp // TK

    # Batch tile: big enough to amortize per-step overhead (~2-4 MiB of input
    # per step), but keep >=2 steps on the parallel axis for v7x megacore.
    per_b_bytes = (M + Naug) * TK * itemsize
    bt_cap = max(1, B // 2) if B >= 2 else 1
    Bt = max(1, min(bt_cap, (4 << 20) // max(per_b_bytes, 1)))
    B_pad = _round_up(B, Bt)

    # Zero-pad (neutral for the matmul and the folded sums).
    a2p = jnp.pad(a2, ((0, B_pad - B), (0, 0), (0, HWp - HW)))
    f2p = jnp.pad(f2, ((0, B_pad - B), (0, 0), (0, HWp - HW)))

    cost = pl.CostEstimate(
        flops=2 * B_pad * M * Naug * HWp,
        transcendentals=(B_pad * M if norm == 2 else 0),
        bytes_accessed=itemsize * (B_pad * (M + Naug) * HWp + B_pad * M * N),
    )

    out = pl.pallas_call(
        _make_kernel(norm, N),
        out_shape=jax.ShapeDtypeStruct((B_pad, M, N), dtype),
        grid=(B_pad // Bt, nk),
        in_specs=[
            pl.BlockSpec((Bt, M, TK), lambda b, k: (b, 0, k)),
            pl.BlockSpec((Bt, Naug, TK), lambda b, k: (b, 0, k)),
        ],
        out_specs=pl.BlockSpec((Bt, M, N), lambda b, k: (b, 0, 0)),
        scratch_shapes=[pltpu.VMEM((Bt, M, Naug), jnp.float32)],
        compiler_params=pltpu.CompilerParams(
            dimension_semantics=("parallel", "arbitrary"),
            vmem_limit_bytes=48 * 1024 * 1024,
        ),
        cost_estimate=cost,
    )(a2p, f2p)
    return out[:B]


def _reference(features, attentions, norm=2):
    """Pure-JAX reference mirroring the PyTorch forward (4-D features path)."""
    B, N, H, W = features.shape
    attentions = _resize_align_corners(attentions.astype(jnp.float32), H, W)
    if norm == 1:
        attentions = attentions + 1e-8
    fm = jnp.einsum('imjk,injk->imn', attentions, features)
    if norm == 1:
        w = jnp.sum(attentions, axis=(2, 3))[..., None]
        fm = fm / w
    if norm == 2:
        nrm = jnp.sqrt(jnp.sum(fm * fm, axis=-1, keepdims=True))
        fm = fm / jnp.maximum(nrm, 1e-12)
    if norm == 3:
        w = jnp.sum(attentions, axis=(2, 3))[..., None] + 1e-8
        fm = fm / w
    return fm


if __name__ == "__main__":
    key = jax.random.PRNGKey(0)
    kf, ka, kf2, ka2 = jax.random.split(key, 4)

    # Case 1: default norm=2, matching spatial sizes.
    B, N, M, H, W = 2, 4, 8, 16, 16
    features = jax.random.normal(kf, (B, N, H, W), dtype=jnp.float32)
    # attentions are typically non-negative (e.g. post-activation maps)
    attentions = jax.nn.relu(jax.random.normal(ka, (B, M, H, W), dtype=jnp.float32))

    out = jax.block_until_ready(attention_pooling(features, attentions, norm=2))
    ref = _reference(features, attentions, norm=2)
    assert out.shape == (B, M, N)
    assert jnp.allclose(out, ref, atol=1e-5, rtol=1e-5)

    # Case 2: norm=1 / norm=3 (ones-row fold), bilinear resize path, HW not a
    # multiple of 128 (exercises the zero-padding).
    B2, N2, M2, H2, W2, AH2, AW2 = 3, 5, 6, 12, 12, 9, 9
    features2 = jax.random.normal(kf2, (B2, N2, H2, W2), dtype=jnp.float32)
    attentions2 = jax.nn.relu(
        jax.random.normal(ka2, (B2, M2, AH2, AW2), dtype=jnp.float32))
    for nrm in (1, 3):
        out2 = jax.block_until_ready(
            attention_pooling(features2, attentions2, norm=nrm))
        ref2 = _reference(features2, attentions2, norm=nrm)
        assert out2.shape == (B2, M2, N2)
        assert jnp.allclose(out2, ref2, atol=1e-4, rtol=1e-4)

    print("KERNEL_OK")
</pallas_src>

<mosaic_0001>
module attributes {stable_mosaic.version = 11 : i64} {
  func.func @kernel(%arg0: i32, %arg1: i32, %arg2: memref<1x8x256xf32, #tpu.memory_space<vmem>>, %arg3: memref<1x4x256xf32, #tpu.memory_space<vmem>>, %arg4: memref<1x8x4xf32, #tpu.memory_space<vmem>>, %arg5: memref<1x8x4xf32, #tpu.memory_space<vmem>>) attributes {dimension_semantics = [#tpu.dimension_semantics<parallel>, #tpu.dimension_semantics<arbitrary>], iteration_bounds = array<i64: 2, 1>, scalar_prefetch = 0 : i64, scratch_operands = 1 : i64, tpu.core_type = #tpu.core_type<tc>, window_params = [{transform_indices = @transform_0, window_bounds = array<i64: 1, 8, 256>}, {transform_indices = @transform_1, window_bounds = array<i64: 1, 4, 256>}, {transform_indices = @transform_2, window_bounds = array<i64: 1, 8, 4>}]} {
    %c0_i32 = arith.constant 0 : i32
    %0 = arith.cmpi eq, %arg1, %c0_i32 : i32
    %1 = arith.extui %0 : i1 to i32
    %c0_i32_0 = arith.constant 0 : i32
    %2 = arith.cmpi ne, %1, %c0_i32_0 : i32
    scf.if %2 {
      %cst_14 = arith.constant 0.000000e+00 : f32
      %12 = vector.broadcast %cst_14 : f32 to vector<1x8x4xf32>
      %c0_15 = arith.constant 0 : index
      %c0_16 = arith.constant 0 : index
      %c0_17 = arith.constant 0 : index
      %13 = vector.load %arg5[%c0_15, %c0_16, %c0_17] : memref<1x8x4xf32, #tpu.memory_space<vmem>>, vector<1x8x4xf32>
      tpu.vector_store %arg5[%c0_15, %c0_16, %c0_17], %12 {strides = array<i32>} : memref<1x8x4xf32, #tpu.memory_space<vmem>>, vector<1x8x4xf32>,
    } else {
    }
    %c0 = arith.constant 0 : index
    %c0_1 = arith.constant 0 : index
    %c0_2 = arith.constant 0 : index
    %3 = vector.load %arg2[%c0, %c0_1, %c0_2] : memref<1x8x256xf32, #tpu.memory_space<vmem>>, vector<1x8x256xf32>
    %c0_3 = arith.constant 0 : index
    %c0_4 = arith.constant 0 : index
    %c0_5 = arith.constant 0 : index
    %4 = vector.load %arg3[%c0_3, %c0_4, %c0_5] : memref<1x4x256xf32, #tpu.memory_space<vmem>>, vector<1x4x256xf32>
    %c0_6 = arith.constant 0 : index
    %c0_7 = arith.constant 0 : index
    %c0_8 = arith.constant 0 : index
    %5 = vector.load %arg5[%c0_6, %c0_7, %c0_8] : memref<1x8x4xf32, #tpu.memory_space<vmem>>, vector<1x8x4xf32>
    %cst = arith.constant dense<0.000000e+00> : vector<1x8x4xf32>
    %6 = tpu.matmul %3, %4, %cst {dimension_numbers = #tpu.dot_dimension_numbers<[2], [2], [1], [1], [0, 0, 0, 1, 1, 1], [0], [0]>} : vector<1x8x256xf32>, vector<1x4x256xf32>, vector<1x8x4xf32> -> vector<1x8x4xf32>
    %7 = arith.addf %5, %6 : vector<1x8x4xf32>
    %c0_9 = arith.constant 0 : index
    %c0_10 = arith.constant 0 : index
    %c0_11 = arith.constant 0 : index
    %8 = vector.load %arg5[%c0_9, %c0_10, %c0_11] : memref<1x8x4xf32, #tpu.memory_space<vmem>>, vector<1x8x4xf32>
    tpu.vector_store %arg5[%c0_9, %c0_10, %c0_11], %7 {strides = array<i32>} : memref<1x8x4xf32, #tpu.memory_space<vmem>>, vector<1x8x4xf32>,
    %c0_i32_12 = arith.constant 0 : i32
    %9 = arith.cmpi eq, %arg1, %c0_i32_12 : i32
    %10 = arith.extui %9 : i1 to i32
    %c0_i32_13 = arith.constant 0 : i32
    %11 = arith.cmpi ne, %10, %c0_i32_13 : i32
    scf.if %11 {
      %c0_14 = arith.constant 0 : index
      %c0_15 = arith.constant 0 : index
      %c0_16 = arith.constant 0 : index
      %12 = vector.load %arg5[%c0_14, %c0_15, %c0_16] : memref<1x8x4xf32, #tpu.memory_space<vmem>>, vector<1x8x4xf32>
      %13 = arith.mulf %12, %12 : vector<1x8x4xf32>
      %cst_17 = arith.constant dense<0.000000e+00> : vector<1x8xf32>
      %14 = vector.multi_reduction <add>, %13, %cst_17 [2] : vector<1x8x4xf32> to vector<1x8xf32>
      %15 = vector.shape_cast %14 : vector<1x8xf32> to vector<1x8x1xf32>
      %cst_18 = arith.constant 1.000000e-24 : f32
      %16 = vector.broadcast %cst_18 : f32 to vector<1x8x1xf32>
      %17 = arith.maximumf %15, %16 : vector<1x8x1xf32>
      %18 = math.rsqrt %17 : vector<1x8x1xf32>
      %19 = vector.broadcast %18 : vector<1x8x1xf32> to vector<1x8x4xf32>
      %20 = arith.mulf %12, %19 : vector<1x8x4xf32>
      %c0_19 = arith.constant 0 : index
      %c0_20 = arith.constant 0 : index
      %c0_21 = arith.constant 0 : index
      %21 = vector.load %arg4[%c0_19, %c0_20, %c0_21] : memref<1x8x4xf32, #tpu.memory_space<vmem>>, vector<1x8x4xf32>
      tpu.vector_store %arg4[%c0_19, %c0_20, %c0_21], %20 {strides = array<i32>} : memref<1x8x4xf32, #tpu.memory_space<vmem>>, vector<1x8x4xf32>,
    } else {
    }
    return
  }
  func.func @transform_0(%arg0: i32, %arg1: i32) -> (i32, i32, i32) {
    %c0_i32 = arith.constant 0 : i32
    %c0_i32_0 = arith.constant 0 : i32
    return %arg0, %c0_i32, %arg1 : i32, i32, i32
  }
  func.func @transform_1(%arg0: i32, %arg1: i32) -> (i32, i32, i32) {
    %c0_i32 = arith.constant 0 : i32
    %c0_i32_0 = arith.constant 0 : i32
    return %arg0, %c0_i32, %arg1 : i32, i32, i32
  }
  func.func @transform_2(%arg0: i32, %arg1: i32) -> (i32, i32, i32) {
    %c0_i32 = arith.constant 0 : i32
    %c0_i32_0 = arith.constant 0 : i32
    %c0_i32_1 = arith.constant 0 : i32
    return %arg0, %c0_i32, %c0_i32_0 : i32, i32, i32
  }
}

</mosaic_0001>

<llo_original>
// kernel: attention_pooling.1
$region0: #{attention_pooling.1}
  #allocation0 [shape = 'u32[]', space=smem, size = 0x4, offset = 0x4, fixed_abs, tag = 'smem constant byte address 0x4 - core index']
  #allocation1 [shape = 'u32[144,128]{1,0:T(1,128)}', space=vmem, size = 0x12000, scoped, tag = 'internal scratch']
  #allocation2 [shape = 'f32[1,8,4]{2,1,0:T(8,128)}', space=vmem, size = 0x1000, scoped, tag = 'scratch operand']
  %s0 = inlined_call_operand.vmem [shape: f32[2,8,256], index: 0, kind: input, shape index: {}]
  %s1 = inlined_call_operand.vmem [shape: f32[2,4,256], index: 1, kind: input, shape index: {}]
  %s2 = inlined_call_operand.vmem [shape: f32[2,8,4], index: 2, kind: output, shape index: {}]
  %s3 = sld [smem:[#allocation0]]
  $region49: #{attention_pooling.1} parent=0
    _
  %s5 = ssub.s32 1, %s3
  %s6 = scalar_select 0, %s5, %s3
  loop: start=0, step=1, limit=4
  $region2: #{attention_pooling.1} parent=0 // loop_pre_header
    _
  $region3: #{attention_pooling.1} parent=0 // loop_header
    %s8 = sphi 0, %s12
    %p9 = scmp.ge.s32.totalorder %s8, 4
    %s15 = sphi 0, %s27
    %s16 = sphi 0, %s23
    %s17 = sphi 0, %s15
    %s18 = sphi 0, %s16
    %s19 = sphi 0, %s17
    %s20 = sphi 0, %s18
    %s32 = sphi 0, %s34
    %s35 = sphi 0, %s32
    %s36 = sphi 0, %s35
    %s52 = sphi 0, %s36
    %s60 = sphi 0, %s62
    %s63 = sphi 0, %s60
    %s64 = sphi 0, %s63
    %s80 = sphi 0, %s64
    %s86 = sphi 0, %s88
    %s89 = sphi 0, %s86
    %s90 = sphi 0, %s89
    %s106 = sphi 0, %s90
  $region4: #{attention_pooling.1} parent=0 // loop_header_branch
    %11 = sbr.rel (%p9) target = $region8
  $region5: #{attention_pooling.1} parent=0 // loop_body
    %s13 = ssub.s32 %s8, 1
    %s14 = ssub.s32 %s8, 2
    %s21 = sadd.s32 1, %s16
    %p22 = scmp.ge.s32.totalorder %s21, 1
    %s23 = scalar_select %p22, 0, %s21
    %s24 = sadd.s32 1, %s15
    %s25 = scalar_select %p22, %s24, %s15
    %p26 = scmp.ge.s32.totalorder %s25, 2
    %s27 = scalar_select %p26, 0, %s25
    %s28 = ssub.s32 %s15, %s27
    %s29 = ssub.s32 %s16, %s23
    %s30 = sor.u32 %s28, %s29
    %p31 = scmp.eq.s32.totalorder %s30, 0
    %s33 = sadd.s32 %s32, 1
    %s34 = scalar_select %p31, %s32, %s33
    %p37 = pneg %p31
    %p38 = scmp.eq.s32.totalorder %s8, 1
    %p39 = por %p37, %p38
    %p40 = scmp.ne.s32.totalorder %s32, %s35
    %p41 = scmp.eq.s32.totalorder %s8, 0
    %p42 = por %p40, %p41
    %p43 = scmp.ne.s32.totalorder %s32, %s35
    %p44 = scmp.eq.s32.totalorder %s13, 1
    %p45 = por %p43, %p44
    %p46 = scmp.ne.s32.totalorder %s35, %s36
    %p47 = scmp.eq.s32.totalorder %s13, 0
    %p48 = por %p46, %p47
    %p49 = scmp.ne.s32.totalorder %s35, %s36
    %p50 = scmp.eq.s32.totalorder %s14, 1
    %p51 = por %p49, %p50
    %p53 = scmp.ne.s32.totalorder %s36, %s52
    %p54 = scmp.eq.s32.totalorder %s14, 0
    %p55 = por %p53, %p54
    %s56 = ssub.s32 %s15, %s27
    %s57 = ssub.s32 %s16, %s23
    %s58 = sor.u32 %s56, %s57
    %p59 = scmp.eq.s32.totalorder %s58, 0
    %s61 = sadd.s32 %s60, 1
    %s62 = scalar_select %p59, %s60, %s61
    %p65 = pneg %p59
    %p66 = scmp.eq.s32.totalorder %s8, 1
    %p67 = por %p65, %p66
    %p68 = scmp.ne.s32.totalorder %s60, %s63
    %p69 = scmp.eq.s32.totalorder %s8, 0
    %p70 = por %p68, %p69
    %p71 = scmp.ne.s32.totalorder %s60, %s63
    %p72 = scmp.eq.s32.totalorder %s13, 1
    %p73 = por %p71, %p72
    %p74 = scmp.ne.s32.totalorder %s63, %s64
    %p75 = scmp.eq.s32.totalorder %s13, 0
    %p76 = por %p74, %p75
    %p77 = scmp.ne.s32.totalorder %s63, %s64
    %p78 = scmp.eq.s32.totalorder %s14, 1
    %p79 = por %p77, %p78
    %p81 = scmp.ne.s32.totalorder %s64, %s80
    %p82 = scmp.eq.s32.totalorder %s14, 0
    %p83 = por %p81, %p82
    %s84 = ssub.s32 %s15, %s27
    %p85 = scmp.eq.s32.totalorder %s84, 0
    %s87 = sadd.s32 %s86, 1
    %s88 = scalar_select %p85, %s86, %s87
    %p91 = pneg %p85
    %p92 = scmp.eq.s32.totalorder %s8, 1
    %p93 = por %p91, %p92
    %p94 = scmp.ne.s32.totalorder %s86, %s89
    %p95 = scmp.eq.s32.totalorder %s8, 0
    %p96 = por %p94, %p95
    %p97 = scmp.ne.s32.totalorder %s86, %s89
    %p98 = scmp.eq.s32.totalorder %s13, 1
    %p99 = por %p97, %p98
    %p100 = scmp.ne.s32.totalorder %s89, %s90
    %p101 = scmp.eq.s32.totalorder %s13, 0
    %p102 = por %p100, %p101
    %p103 = scmp.ne.s32.totalorder %s89, %s90
    %p104 = scmp.eq.s32.totalorder %s14, 1
    %p105 = por %p103, %p104
    %p107 = scmp.ne.s32.totalorder %s90, %s106
    %p108 = scmp.eq.s32.totalorder %s14, 0
    %p109 = por %p107, %p108
    %p110 = scmp.le.s32.totalorder 1, %s8
    %p111 = scmp.lt.s32.totalorder %s8, 3
    %p112 = pnand %p110, %p111
    %p113 = pneg %p112
    // Predicated region
    $region9: #{attention_pooling.1} parent=5 // pred_check
      _
    $region10: #{attention_pooling.1} parent=5 // pred_check_branch
      %115 = sbr.rel (%p112) target = $region12
    $region11: #{attention_pooling.1} parent=5 // pred_region
      %s116 = ssub.s32 %s8, 1
    $region12: #{attention_pooling.1} parent=5 // pred_fallthru
      _
    %p117 = scmp.lt.s32.totalorder %s8, 2
    // Predicated region
    $region13: #{attention_pooling.1} parent=5 // pred_check
      %p118 = pneg %p117
    $region14: #{attention_pooling.1} parent=5 // pred_check_branch
      %120 = sbr.rel (%p118) target = $region16
    $region15: #{attention_pooling.1} parent=5 // pred_region
      // Predicated region
      $region17: #{attention_pooling.1} parent=15 // pred_check
        %p121 = pneg %p42
      $region18: #{attention_pooling.1} parent=15 // pred_check_branch
        %123 = sbr.rel (%p121) target = $region20
      $region19: #{attention_pooling.1} parent=15 // pred_region
        %s124 = smul.u32 2, %s16
        %p125 = scmp.lt.s32.totalorder %s15, 1
        %s126 = scalar_select %p125, %s15, 1
        %p127 = scmp.lt.s32.totalorder %s124, 1
        %s128 = scalar_select %p127, %s124, 1
        %s129 = smul.addr %s126, 2
        %s130 = sadd.s32 %s128, %s129
        %s131 = smul.addr %s130, 8
        %s132 = scalar_lea.vmem %s0, %s131
        %s133 = smul.u32 2, %s16
      $region20: #{attention_pooling.1} parent=15 // pred_fallthru
        _
      // Predicated region
      $region21: #{attention_pooling.1} parent=15 // pred_check
        %p134 = pneg %p70
      $region22: #{attention_pooling.1} parent=15 // pred_check_branch
        %136 = sbr.rel (%p134) target = $region24
      $region23: #{attention_pooling.1} parent=15 // pred_region
        %s137 = smul.u32 2, %s16
        %p138 = scmp.lt.s32.totalorder %s15, 1
        %s139 = scalar_select %p138, %s15, 1
        %p140 = scmp.lt.s32.totalorder %s137, 1
        %s141 = scalar_select %p140, %s137, 1
        %s142 = smul.addr %s139, 2
        %s143 = sadd.s32 %s141, %s142
        %s144 = smul.addr %s143, 4
        %s145 = scalar_lea.vmem %s1, %s144
        %s146 = smul.u32 2, %s16
      $region24: #{attention_pooling.1} parent=15 // pred_fallthru
        _
    $region16: #{attention_pooling.1} parent=5 // pred_fallthru
      _
    %p147 = scmp.le.s32.totalorder 1, %s8
    %p148 = scmp.lt.s32.totalorder %s8, 3
    %p149 = pnand %p147, %p148
    %p150 = pneg %p149
    // Predicated region
    $region25: #{attention_pooling.1} parent=5 // pred_check
      _
    $region26: #{attention_pooling.1} parent=5 // pred_check_branch
      %152 = sbr.rel (%p149) target = $region28
    $region27: #{attention_pooling.1} parent=5 // pred_region
      %s153 = ssub.s32 %s8, 1
      %s154 = smul.u32 2, %s18
      %p155 = scmp.lt.s32.totalorder %s17, 1
      %s156 = scalar_select %p155, %s17, 1
      %p157 = scmp.lt.s32.totalorder %s154, 1
      %s158 = scalar_select %p157, %s154, 1
      %s159 = smul.addr %s156, 2
      %s160 = sadd.s32 %s158, %s159
      %s161 = smul.addr %s160, 8
      %s162 = scalar_lea.vmem %s0, %s161
      %p163 = pneg %p48
      %p164 = pneg %p45
      %s165 = smul.u32 2, %s18
      %p166 = scmp.lt.s32.totalorder %s17, 1
      %s167 = scalar_select %p166, %s17, 1
      %p168 = scmp.lt.s32.totalorder %s165, 1
      %s169 = scalar_select %p168, %s165, 1
      %s170 = smul.addr %s167, 2
      %s171 = sadd.s32 %s169, %s170
      %s172 = smul.addr %s171, 4
      %s173 = scalar_lea.vmem %s1, %s172
      %p174 = pneg %p76
      %p175 = pneg %p73
      %p176 = pneg %p102
      %p177 = pneg %p99
      %p178 = scmp.lt.s32.totalorder %s17, 1
      %s179 = scalar_select %p178, %s17, 1
      %s180 = smul.addr %s179, 8
      %s181 = scalar_lea.vmem %s2, %s180
      %s182 = smul.u32 2, %s18
      %p183 = scmp.lt.s32.totalorder %s17, 1
      %s184 = scalar_select %p183, %s17, 1
      %p185 = scmp.lt.s32.totalorder %s182, 1
      %s186 = scalar_select %p185, %s182, 1
      %s187 = smul.addr %s184, 2
      %s188 = sadd.s32 %s186, %s187
      %s189 = smul.addr %s188, 8
      %s190 = scalar_lea.vmem %s0, %s189
      %s191 = smul.u32 2, %s18
      %s192 = smul.u32 2, %s18
      %p193 = scmp.lt.s32.totalorder %s17, 1
      %s194 = scalar_select %p193, %s17, 1
      %p195 = scmp.lt.s32.totalorder %s192, 1
      %s196 = scalar_select %p195, %s192, 1
      %s197 = smul.addr %s194, 2
      %s198 = sadd.s32 %s196, %s197
      %s199 = smul.addr %s198, 4
      %s200 = scalar_lea.vmem %s1, %s199
      %s201 = smul.u32 2, %s18
      %p202 = scmp.lt.s32.totalorder %s17, 1
      %s203 = scalar_select %p202, %s17, 1
      %s204 = smul.addr %s203, 8
      %s205 = scalar_lea.vmem %s2, %s204
      %p206 = scmp.eq.s32.totalorder %s18, 0
      // Predicated region
      $region29: #{attention_pooling.1} parent=27 // pred_check
        %p207 = pneg %p206
      $region30: #{attention_pooling.1} parent=27 // pred_check_branch
        %209 = sbr.rel (%p207) target = $region32
      $region31: #{attention_pooling.1} parent=27 // pred_region
        %vm210 = vcmask 31744
        %211 = vst.msk [vmem:[#allocation2] sm:$0xff] %vm210, 0.0
      $region32: #{attention_pooling.1} parent=27 // pred_fallthru
        _
      %v212 = vld [vmem:[%s190] sm:$0xff]
      %v213 = vld [vmem:[%s190 + $0x8] sm:$0xff]
      %v214 = vld [vmem:[%s200] sm:$0xff]
      %v215 = vld [vmem:[#allocation2] sm:$0xff]
      %v217 = vcombine.high %v214, %v214
      %219 = vmatprep.subr.mxu0 0.0
      %220 = vmatpush1.xpose.msra.mxu0 0.0
      %221 = vmatprep.subr.mxu0 0.0
      %222 = vmatpush1.xpose.msra.mxu0 0.0
      %223 = vmatprep.subr.mxu0 0.0
      %224 = vmatpush1.xpose.msra.mxu0 0.0
      %225 = vmatprep.subr.mxu0 0.0
      %226 = vmatpush1.xpose.msra.mxu0 0.0
      %227 = vmatprep.subr.mxu0 0.0
      %228 = vmatpush1.xpose.msra.mxu0 0.0
      %229 = vmatprep.subr.mxu0 0.0
      %230 = vmatpush1.xpose.msra.mxu0 0.0
      %231 = vmatprep.subr.mxu0 0.0
      %232 = vmatpush1.xpose.msra.mxu0 0.0
      %233 = vmatprep.subr.mxu0 0.0
      %234 = vmatpush1.xpose.msra.mxu0 0.0
      %235 = vmatprep.subr.mxu0 0.0
      %236 = vmatpush1.xpose.msra.mxu0 0.0
      %237 = vmatprep.subr.mxu0 0.0
      %238 = vmatpush1.xpose.msra.mxu0 0.0
      %239 = vmatprep.subr.mxu0 0.0
      %240 = vmatpush1.xpose.msra.mxu0 0.0
      %241 = vmatprep.subr.mxu0 0.0
      %242 = vmatpush1.xpose.msra.mxu0 0.0
      %243 = vmatprep.subr.mxu0 0.0
      %244 = vmatpush1.xpose.msra.mxu0 0.0
      %245 = vmatprep.subr.mxu0 0.0
      %246 = vmatpush1.xpose.msra.mxu0 0.0
      %247 = vmatprep.subr.mxu0 0.0
      %248 = vmatpush1.xpose.msra.mxu0 0.0
      %249 = vmatprep.subr.mxu0 %v217
      %250 = vmatpush1.xpose.msra.mxu0 %v214
      %251 = vmatprep.subr.mxu0 0.0
      %252 = vmatpush2.xpose.msra.mxu0 0.0
      %253 = vmatprep.subr.mxu0 0.0
      %254 = vmatpush2.xpose.msra.mxu0 0.0
      %255 = vmatprep.subr.mxu0 0.0
      %256 = vmatpush2.xpose.msra.mxu0 0.0
      %257 = vmatprep.subr.mxu0 0.0
      %258 = vmatpush2.xpose.msra.mxu0 0.0
      %259 = vmatprep.subr.mxu0 0.0
      %260 = vmatpush2.xpose.msra.mxu0 0.0
      %261 = vmatprep.subr.mxu0 0.0
      %262 = vmatpush2.xpose.msra.mxu0 0.0
      %263 = vmatprep.subr.mxu0 0.0
      %264 = vmatpush2.xpose.msra.mxu0 0.0
      %265 = vmatprep.subr.mxu0 0.0
      %266 = vmatpush2.xpose.msra.mxu0 0.0
      %267 = vmatprep.subr.mxu0 0.0
      %268 = vmatpush2.xpose.msra.mxu0 0.0
      %269 = vmatprep.subr.mxu0 0.0
      %270 = vmatpush2.xpose.msra.mxu0 0.0
      %271 = vmatprep.subr.mxu0 0.0
      %272 = vmatpush2.xpose.msra.mxu0 0.0
      %273 = vmatprep.subr.mxu0 0.0
      %274 = vmatpush2.xpose.msra.mxu0 0.0
      %275 = vmatprep.subr.mxu0 0.0
      %276 = vmatpush2.xpose.msra.mxu0 0.0
      %277 = vmatprep.subr.mxu0 0.0
      %278 = vmatpush2.xpose.msra.mxu0 0.0
      %279 = vmatprep.subr.mxu0 0.0
      %280 = vmatpush2.xpose.msra.mxu0 0.0
      %281 = vmatprep.subr.mxu0 0.0
      %282 = vmatpush2.xpose.msra.mxu0 0.0
      %283 = vmatprep.mubr.f32.mxu0 %v213
      %284 = vmatmul.mubr.f32.gmra.mxu0 %v212
      %v285 = vpop.f32.mrf.mxu0
      %v286 = vadd.f32 0.0, %v285
      %v287 = vpop.f32.mrf.mxu0
      %288 = vdwg.mxu0
      %v289 = vadd.f32 %v215, %v286
      %vm290 = vcmask 31744
      %291 = vst.msk [vmem:[#allocation2] sm:$0xff] %vm290, %v289
      // Predicated region
      $region33: #{attention_pooling.1} parent=27 // pred_check
        %p292 = pneg %p206
      $region34: #{attention_pooling.1} parent=27 // pred_check_branch
        %294 = sbr.rel (%p292) target = $region36
      $region35: #{attention_pooling.1} parent=27 // pred_region
        %v295 = vld [vmem:[#allocation2] sm:$0xff]
        %v296 = vmul.f32 %v295, %v295
        %v297 = vsel %vm290, %v296, 0.0
        %298 = vadd.xlane.f32.xlu0 %v297
        %v299 = vpop.xlane.xlu0 %298
        %v300 = vmax.f32 %v299, 1e-24
        %v301 = vrsqrt.pop %v300
        %v302 = vmul.f32 %v295, %v301
        %303 = vst.msk [vmem:[%s205] sm:$0xff] %vm290, %v302
      $region36: #{attention_pooling.1} parent=27 // pred_fallthru
        _
      %p304 = scmp.lt.s32.totalorder %s17, 1
      %s305 = scalar_select %p304, %s17, 1
      %s306 = smul.addr %s305, 8
      %s307 = scalar_lea.vmem %s2, %s306
      // Predicated region
      $region37: #{attention_pooling.1} parent=27 // pred_check
        %p308 = pneg %p99
      $region38: #{attention_pooling.1} parent=27 // pred_check_branch
        %310 = sbr.rel (%p308) target = $region40
      $region39: #{attention_pooling.1} parent=27 // pred_region
        _
      $region40: #{attention_pooling.1} parent=27 // pred_fallthru
        _
    $region28: #{attention_pooling.1} parent=5 // pred_fallthru
      _
    %p311 = scmp.le.s32.totalorder 2, %s8
    // Predicated region
    $region41: #{attention_pooling.1} parent=5 // pred_check
      %p312 = pneg %p311
    $region42: #{attention_pooling.1} parent=5 // pred_check_branch
      %314 = sbr.rel (%p312) target = $region44
    $region43: #{attention_pooling.1} parent=5 // pred_region
      %s315 = ssub.s32 %s8, 2
      // Predicated region
      $region45: #{attention_pooling.1} parent=43 // pred_check
        %p316 = pneg %p105
      $region46: #{attention_pooling.1} parent=43 // pred_check_branch
        %318 = sbr.rel (%p316) target = $region48
      $region47: #{attention_pooling.1} parent=43 // pred_region
        %p319 = scmp.lt.s32.totalorder %s19, 1
        %s320 = scalar_select %p319, %s19, 1
        %s321 = smul.addr %s320, 8
        %s322 = scalar_lea.vmem %s2, %s321
      $region48: #{attention_pooling.1} parent=43 // pred_fallthru
        _
    $region44: #{attention_pooling.1} parent=5 // pred_fallthru
      _
  $region6: #{attention_pooling.1} parent=0 // loop_footer
    %s12 = sadd.s32 1, %s8
  $region7: #{attention_pooling.1} parent=0 // loop_footer_branch
    %7 = sbr.rel target = $region3
  $region8: #{attention_pooling.1} parent=0 // loop_exit
    _

</llo_original>
